<compile_context>
chip_gen: v7x
topology: tpu7x:2x2x1
jax: 0.10.0
libtpu: 0.0.40
codegen_flags: <defaults>
</compile_context>

<pallas_src>
import functools

import numpy as np
import jax
import jax.numpy as jnp
from jax.experimental import pallas as pl
from jax.experimental.pallas import tpu as pltpu


# ----------------------------------------------------------------------------
# Pallas kernels
# ----------------------------------------------------------------------------
def mse_partial_kernel(pred_ref, targ_ref, mse_ref, acc_ref):
    """Grid = (row_tiles, time_tiles).  Streams (TM, TT) tiles of predicted /
    target and accumulates sum((pred-targ)^2) per row tile.

      mse_ref : (1, 1, 1) per-row-tile partial sum (written on last time tile)
      acc_ref : (1, TT) f32 VMEM scratch vector accumulator
    """
    j = pl.program_id(1)
    nj = pl.num_programs(1)

    @pl.when(j == 0)
    def _init():
        acc_ref[...] = jnp.zeros_like(acc_ref)

    d = pred_ref[...] - targ_ref[...]
    # Cross-sublane (row) reduce only; stays a vector, no per-step scalar chain.
    acc_ref[...] += jnp.sum(d * d, axis=0, keepdims=True)

    @pl.when(j == nj - 1)
    def _finalize():
        mse_ref[...] = jnp.zeros_like(mse_ref) + jnp.sum(acc_ref[...])


def amp_terms_kernel(amps_ref, wmean_ref, emd_ref, out_ref):
    """Single grid step.  Lane-dense (4, N) inputs; emits 4 raw sums:
    [spatial_sum, emd_sum, amp_penalty_sum, prominence_penalty_sum]."""
    amps = amps_ref[...]           # (4, N)
    wmean = wmean_ref[...]         # (4, N) k-neighbor weighted mean
    emd_exp = emd_ref[...]         # (4, N) EMD expected amplitudes

    sdiff = amps - wmean
    spatial_sum = jnp.sum(sdiff * sdiff)

    ediff = amps - emd_exp
    emd_sum = jnp.sum(ediff * ediff)

    total_amp = jnp.sum(amps, axis=0, keepdims=True)                  # (1, N)
    amp_pen_sum = jnp.sum(jnp.maximum(total_amp - 80.0, 0.0))
    annual = amps[2:3, :]                                             # (1, N)
    other_max = jnp.maximum(jnp.maximum(amps[0:1, :], amps[1:2, :]),
                            amps[3:4, :])                             # (1, N)
    prom_pen_sum = jnp.sum(jnp.maximum(other_max - 1.2 * annual, 0.0))

    # pack 4 scalars into the (1, 4) output block without scalar stores
    lane = jax.lax.broadcasted_iota(jnp.int32, (1, 4), 1)
    out_ref[...] = (jnp.where(lane == 0, spatial_sum, 0.0)
                    + jnp.where(lane == 1, emd_sum, 0.0)
                    + jnp.where(lane == 2, amp_pen_sum, 0.0)
                    + jnp.where(lane == 3, prom_pen_sum, 0.0))


# ----------------------------------------------------------------------------
# Wrapper
# ----------------------------------------------------------------------------
_ROW_TILE_PREFS = (512, 256, 128, 64, 32, 16, 8)
_COL_TILE_PREFS = (4096, 2048, 1024, 512, 256, 128)


def _round_up(x, m):
    return ((x + m - 1) // m) * m


def _largest_divisor(dim, prefs):
    for p in prefs:
        if dim % p == 0:
            return p
    return prefs[-1]


def emd_informed_loss(predicted, target, seasonal_amplitudes,
                      neighbor_idx, neighbor_weights, emd_expected,
                      alpha_spatial=0.15, alpha_emd=0.2, alpha_physics=0.05,
                      block_rows=None, block_cols=None):
    """Returns (total_loss, dict of components) like EMDInformedLoss.forward."""
    predicted = predicted.astype(jnp.float32)
    target = target.astype(jnp.float32)
    seasonal_amplitudes = seasonal_amplitudes.astype(jnp.float32)
    n, t = predicted.shape

    # ---- tile selection: always (8, 128)-aligned, no full-extent fallback ---
    if block_rows is not None and block_rows > 0 and block_rows % 8 == 0:
        tm = int(block_rows)
        n_pad = _round_up(n, tm)
    else:
        n_pad = _round_up(n, 8)
        tm = _largest_divisor(n_pad, _ROW_TILE_PREFS)
    if block_cols is not None and block_cols > 0 and block_cols % 128 == 0:
        tt = int(block_cols)
        t_pad = _round_up(t, tt)
    else:
        t_pad = _round_up(t, 128)
        tt = _largest_divisor(t_pad, _COL_TILE_PREFS)

    # Guarantee >= 2 row tiles so v7x's second TensorCore is not idle.
    while n_pad // tm < 2 and tm >= 16 and tm % 16 == 0:
        tm //= 2

    gr, gc = n_pad // tm, t_pad // tt

    # ---- zero-pad the streamed inputs (padding contributes 0 to the sum) ----
    if (n_pad, t_pad) != (n, t):
        pad = ((0, n_pad - n), (0, t_pad - t))
        predicted = jnp.pad(predicted, pad)
        target = jnp.pad(target, pad)

    # Explicit VMEM budget: 2 streamed inputs x 2 buffers x tile + accumulator
    # scratch + headroom for outputs.  Max auto config (512x4096 f32) is ~36 MiB
    # => fits v7x's 64 MiB physical VMEM and v5e/v6e's 128 MiB.
    tile_bytes = tm * tt * 4
    vmem_limit = int(2 * 2 * tile_bytes + 8 * tt * 4 + 4 * 1024 * 1024)

    mse_partials = pl.pallas_call(
        mse_partial_kernel,
        grid=(gr, gc),
        in_specs=[
            pl.BlockSpec((tm, tt), lambda i, j: (i, j)),     # predicted tile
            pl.BlockSpec((tm, tt), lambda i, j: (i, j)),     # target tile
        ],
        out_specs=pl.BlockSpec((1, 1, 1), lambda i, j: (i, 0, 0)),
        out_shape=jax.ShapeDtypeStruct((gr, 1, 1), jnp.float32),
        scratch_shapes=[pltpu.VMEM((1, tt), jnp.float32)],
        compiler_params=pltpu.CompilerParams(
            dimension_semantics=("parallel", "arbitrary"),
            vmem_limit_bytes=vmem_limit),
    )(predicted, target)

    # k-sparse neighbor weighted mean (replaces the dense (N,N) matmul);
    # the tiny gather stays in XLA, the reductions run in the Pallas kernel.
    nbr_amps = jnp.take(seasonal_amplitudes, neighbor_idx, axis=0)       # (N, k, 4)
    wmean = jnp.sum(nbr_amps * neighbor_weights[:, :, None], axis=1)     # (N, 4)

    amps_t = jnp.transpose(seasonal_amplitudes)                          # (4, N)
    wmean_t = jnp.transpose(wmean)
    emd_t = jnp.transpose(emd_expected.astype(jnp.float32))

    amp_terms = pl.pallas_call(
        amp_terms_kernel,
        grid=(1,),
        in_specs=[
            pl.BlockSpec((4, n), lambda i: (0, 0)),
            pl.BlockSpec((4, n), lambda i: (0, 0)),
            pl.BlockSpec((4, n), lambda i: (0, 0)),
        ],
        out_specs=pl.BlockSpec((1, 4), lambda i: (0, 0)),
        out_shape=jax.ShapeDtypeStruct((1, 4), jnp.float32),
    )(amps_t, wmean_t, emd_t)

    # ---- normalize / combine (by ORIGINAL n, t) ------------------------------
    primary = jnp.sum(mse_partials) / float(n * t)
    spatial = amp_terms[0, 0] / (n * 4.0)
    emd = amp_terms[0, 1] / (n * 4.0)
    physics = (amp_terms[0, 2] + amp_terms[0, 3]) / float(n)

    total = (primary + alpha_spatial * spatial + alpha_emd * emd
             + alpha_physics * physics)
    components = {'primary': primary, 'spatial': spatial,
                  'emd': emd, 'physics': physics}
    return total, components


# ----------------------------------------------------------------------------
# Host-side glue (deterministic "model" state mirroring EMDInformedInSARModel)
# ----------------------------------------------------------------------------
def build_neighbor_graph(coords, n_neighbors):
    """k-NN indices + row-normalized weights (numpy port of
    _build_neighbor_graph; brute-force distances instead of a kd_tree)."""
    dist = np.sqrt(np.sum((coords[:, None, :] - coords[None, :, :]) ** 2, -1))
    order = np.argsort(dist, axis=1)
    idx = order[:, 1:n_neighbors + 1]                     # exclude self
    nd = np.take_along_axis(dist, idx, axis=1)
    wts = np.exp(-nd / np.mean(nd))
    wts = wts / (np.sum(wts, axis=1, keepdims=True) + 1e-6)
    return idx.astype(np.int32), wts.astype(np.float32)


def get_emd_amplitude_bounds(imfs, period_index, n_stations):
    """Numpy port of EMDInformedInSARModel._get_emd_amplitude_bounds."""
    # TODO(synk): zero-crossing / np.std IMF analysis stays on host (pure numpy
    # preprocessing of non-learnable data; no Pallas equivalent needed).
    period_to_freq_band = {0: (60, 120), 1: (120, 280), 2: (280, 400), 3: (400, 1000)}
    target = period_to_freq_band.get(period_index, (60, 1000))
    default_bounds = {0: (0, 15), 1: (0, 25), 2: (0, 40), 3: (0, 30)}
    bounds = []
    for s in range(n_stations):
        if s < len(imfs):
            station_imfs = imfs[s]
            station_amps = []
            for k in range(station_imfs.shape[0]):
                sig = station_imfs[k]
                if np.any(sig != 0):
                    zc = np.where(np.diff(np.signbit(sig)))[0]
                    if len(zc) > 2:
                        est_period = np.mean(np.diff(zc)) * 6 * 2
                        if target[0] <= est_period <= target[1]:
                            station_amps.append(np.std(sig))
            if station_amps:
                m = np.mean(station_amps)
                sd = np.std(station_amps) if len(station_amps) > 1 else m * 0.3
                bounds.append((float(max(0, m - 2 * sd)), float(m + 2 * sd)))
            else:
                bounds.append(default_bounds.get(period_index, (0, 30)))
        else:
            bounds.append(default_bounds.get(period_index, (0, 30)))
    return bounds


def reference_loss_numpy(pred, targ, amps, nbr_idx, nbr_w, emd_exp,
                         a_sp=0.15, a_emd=0.2, a_ph=0.05):
    n = amps.shape[0]
    primary = np.mean((pred - targ) ** 2)
    wm = np.einsum('nk,nkc->nc', nbr_w, amps[nbr_idx])
    spatial = np.sum((amps - wm) ** 2) / (n * 4)
    emd = np.mean((amps - emd_exp) ** 2)
    total_amp = np.sum(amps, axis=1)
    amp_pen = np.mean(np.maximum(total_amp - 80.0, 0.0))
    other_max = np.max(amps[:, [0, 1, 3]], axis=1)
    prom_pen = np.mean(np.maximum(other_max - 1.2 * amps[:, 2], 0.0))
    physics = amp_pen + prom_pen
    total = primary + a_sp * spatial + a_emd * emd + a_ph * physics
    return {'total': total, 'primary': primary, 'spatial': spatial,
            'emd': emd, 'physics': physics}


if __name__ == "__main__":
    n_stations, n_timepoints, n_neighbors = 64, 256, 8
    n_imfs, t_emd = 3, 60

    key = jax.random.PRNGKey(0)
    k_pred, k_targ, k_coord, k_amp = jax.random.split(key, 4)

    # Loss inputs
    predicted = jax.random.normal(k_pred, (n_stations, n_timepoints), jnp.float32) * 10.0
    target = jax.random.normal(k_targ, (n_stations, n_timepoints), jnp.float32) * 10.0

    # Model state (deterministic init, shapes per EMDInformedInSARModel.__init__)
    coordinates = np.asarray(jax.random.uniform(k_coord, (n_stations, 2)) * 100.0)
    seasonal_amplitudes = jax.random.uniform(k_amp, (n_stations, 4), jnp.float32) * 30.0

    # Synthetic EMD decomposition -> expected amplitudes (host preprocessing)
    t_axis = np.arange(t_emd, dtype=np.float32)
    imfs = np.zeros((n_stations, n_imfs, t_emd), dtype=np.float32)
    for s in range(n_stations):
        for k in range(n_imfs):
            period_samples = 6.0 + 4.0 * k + 0.5 * (s % 8)
            amp = 2.0 + 0.3 * (s % 8) + k
            imfs[s, k] = amp * np.sin(2 * np.pi * t_axis / period_samples + 0.1 * s)
    emd_expected = np.zeros((n_stations, 4), dtype=np.float32)
    for p in range(4):
        bounds = get_emd_amplitude_bounds(imfs, p, n_stations)
        for s in range(n_stations):
            lo, hi = bounds[s]
            emd_expected[s, p] = 0.5 * (lo + hi)

    nbr_idx, nbr_w = build_neighbor_graph(coordinates, n_neighbors)

    # Tiles chosen so the demo exercises a non-trivial (2, 2) grid
    # (including the j==0 init / j==last finalize paths of the accumulator).
    loss_fn = jax.jit(functools.partial(emd_informed_loss,
                                        block_rows=32, block_cols=128))
    total, comps = loss_fn(predicted, target, seasonal_amplitudes,
                           jnp.asarray(nbr_idx), jnp.asarray(nbr_w),
                           jnp.asarray(emd_expected))
    total = jax.block_until_ready(total)

    ref = reference_loss_numpy(np.asarray(predicted), np.asarray(target),
                               np.asarray(seasonal_amplitudes),
                               nbr_idx, nbr_w, emd_expected)
    np.testing.assert_allclose(float(total), ref['total'], rtol=1e-4, atol=1e-4)
    for name in ('primary', 'spatial', 'emd', 'physics'):
        np.testing.assert_allclose(float(comps[name]), ref[name],
                                   rtol=1e-4, atol=1e-4)

    # Also exercise the auto-tile path (padding + >=2 row tiles logic).
    total_auto, _ = jax.jit(emd_informed_loss)(
        predicted, target, seasonal_amplitudes,
        jnp.asarray(nbr_idx), jnp.asarray(nbr_w), jnp.asarray(emd_expected))
    total_auto = jax.block_until_ready(total_auto)
    np.testing.assert_allclose(float(total_auto), ref['total'], rtol=1e-4, atol=1e-4)

    print("KERNEL_OK")
</pallas_src>

<mosaic_0001>
module attributes {stable_mosaic.version = 11 : i64} {
  func.func @mse_partial_kernel(%arg0: i32, %arg1: i32, %arg2: memref<32x128xf32, #tpu.memory_space<vmem>>, %arg3: memref<32x128xf32, #tpu.memory_space<vmem>>, %arg4: memref<1x1x1xf32, #tpu.memory_space<vmem>>, %arg5: memref<1x128xf32, #tpu.memory_space<vmem>>) attributes {dimension_semantics = [#tpu.dimension_semantics<parallel>, #tpu.dimension_semantics<arbitrary>], iteration_bounds = array<i64: 2, 2>, scalar_prefetch = 0 : i64, scratch_operands = 1 : i64, tpu.core_type = #tpu.core_type<tc>, window_params = [{transform_indices = @transform_0, window_bounds = array<i64: 32, 128>}, {transform_indices = @transform_1, window_bounds = array<i64: 32, 128>}, {transform_indices = @transform_2, window_bounds = array<i64: 1, 1, 1>}]} {
    %c0_i32 = arith.constant 0 : i32
    %0 = arith.cmpi eq, %arg1, %c0_i32 : i32
    %1 = arith.extui %0 : i1 to i32
    %c0_i32_0 = arith.constant 0 : i32
    %2 = arith.cmpi ne, %1, %c0_i32_0 : i32
    scf.if %2 {
      %cst_9 = arith.constant 0.000000e+00 : f32
      %15 = vector.broadcast %cst_9 : f32 to vector<1x128xf32>
      %c0_10 = arith.constant 0 : index
      %c0_11 = arith.constant 0 : index
      %16 = vector.load %arg5[%c0_10, %c0_11] : memref<1x128xf32, #tpu.memory_space<vmem>>, vector<1x128xf32>
      tpu.vector_store %arg5[%c0_10, %c0_11], %15 {strides = array<i32>} : memref<1x128xf32, #tpu.memory_space<vmem>>, vector<1x128xf32>,
    } else {
    }
    %c0 = arith.constant 0 : index
    %c0_1 = arith.constant 0 : index
    %3 = vector.load %arg2[%c0, %c0_1] : memref<32x128xf32, #tpu.memory_space<vmem>>, vector<32x128xf32>
    %c0_2 = arith.constant 0 : index
    %c0_3 = arith.constant 0 : index
    %4 = vector.load %arg3[%c0_2, %c0_3] : memref<32x128xf32, #tpu.memory_space<vmem>>, vector<32x128xf32>
    %5 = arith.subf %3, %4 : vector<32x128xf32>
    %c0_4 = arith.constant 0 : index
    %c0_5 = arith.constant 0 : index
    %6 = vector.load %arg5[%c0_4, %c0_5] : memref<1x128xf32, #tpu.memory_space<vmem>>, vector<1x128xf32>
    %7 = arith.mulf %5, %5 : vector<32x128xf32>
    %cst = arith.constant dense<0.000000e+00> : vector<128xf32>
    %8 = vector.multi_reduction <add>, %7, %cst [0] : vector<32x128xf32> to vector<128xf32>
    %9 = vector.shape_cast %8 : vector<128xf32> to vector<1x128xf32>
    %10 = arith.addf %6, %9 : vector<1x128xf32>
    %c0_6 = arith.constant 0 : index
    %c0_7 = arith.constant 0 : index
    %11 = vector.load %arg5[%c0_6, %c0_7] : memref<1x128xf32, #tpu.memory_space<vmem>>, vector<1x128xf32>
    tpu.vector_store %arg5[%c0_6, %c0_7], %10 {strides = array<i32>} : memref<1x128xf32, #tpu.memory_space<vmem>>, vector<1x128xf32>,
    %c1_i32 = arith.constant 1 : i32
    %12 = arith.cmpi eq, %arg1, %c1_i32 : i32
    %13 = arith.extui %12 : i1 to i32
    %c0_i32_8 = arith.constant 0 : i32
    %14 = arith.cmpi ne, %13, %c0_i32_8 : i32
    scf.if %14 {
      %cst_9 = arith.constant 0.000000e+00 : f32
      %15 = vector.broadcast %cst_9 : f32 to vector<1x1x1xf32>
      %c0_10 = arith.constant 0 : index
      %c0_11 = arith.constant 0 : index
      %16 = vector.load %arg5[%c0_10, %c0_11] : memref<1x128xf32, #tpu.memory_space<vmem>>, vector<1x128xf32>
      %17 = vector.shape_cast %16 : vector<1x128xf32> to vector<1x1x128xf32>
      %cst_12 = arith.constant dense<0.000000e+00> : vector<1xf32>
      %18 = vector.multi_reduction <add>, %17, %cst_12 [1, 2] : vector<1x1x128xf32> to vector<1xf32>
      %19 = vector.shape_cast %18 : vector<1xf32> to vector<1x1x1xf32>
      %20 = vector.extract %19[0, 0, 0] : f32 from vector<1x1x1xf32>
      %21 = vector.broadcast %20 : f32 to vector<1x1x1xf32>
      %22 = arith.addf %15, %21 : vector<1x1x1xf32>
      %c0_13 = arith.constant 0 : index
      %c0_14 = arith.constant 0 : index
      %c0_15 = arith.constant 0 : index
      %23 = vector.load %arg4[%c0_13, %c0_14, %c0_15] : memref<1x1x1xf32, #tpu.memory_space<vmem>>, vector<1x1x1xf32>
      tpu.vector_store %arg4[%c0_13, %c0_14, %c0_15], %22 {strides = array<i32>} : memref<1x1x1xf32, #tpu.memory_space<vmem>>, vector<1x1x1xf32>,
    } else {
    }
    return
  }
  func.func @transform_0(%arg0: i32, %arg1: i32) -> (i32, i32) {
    %c0_i32 = arith.constant 0 : i32
    return %arg0, %arg1 : i32, i32
  }
  func.func @transform_1(%arg0: i32, %arg1: i32) -> (i32, i32) {
    %c0_i32 = arith.constant 0 : i32
    return %arg0, %arg1 : i32, i32
  }
  func.func @transform_2(%arg0: i32, %arg1: i32) -> (i32, i32, i32) {
    %c0_i32 = arith.constant 0 : i32
    %c0_i32_0 = arith.constant 0 : i32
    %c0_i32_1 = arith.constant 0 : i32
    return %arg0, %c0_i32, %c0_i32_0 : i32, i32, i32
  }
}

module attributes {stable_mosaic.version = 11 : i64} {
  func.func @amp_terms_kernel(%arg0: i32, %arg1: memref<4x64xf32, #tpu.memory_space<vmem>>, %arg2: memref<4x64xf32, #tpu.memory_space<vmem>>, %arg3: memref<4x64xf32, #tpu.memory_space<vmem>>, %arg4: memref<1x4xf32, #tpu.memory_space<vmem>>) attributes {dimension_semantics = [#tpu.dimension_semantics<arbitrary>], iteration_bounds = array<i64: 1>, scalar_prefetch = 0 : i64, scratch_operands = 0 : i64, tpu.core_type = #tpu.core_type<tc>, window_params = [{pipeline_mode = #tpu.pipeline_mode<synchronous>, transform_indices = @transform_0, window_bounds = array<i64: 4, 64>}, {pipeline_mode = #tpu.pipeline_mode<synchronous>, transform_indices = @transform_1, window_bounds = array<i64: 4, 64>}, {pipeline_mode = #tpu.pipeline_mode<synchronous>, transform_indices = @transform_2, window_bounds = array<i64: 4, 64>}, {pipeline_mode = #tpu.pipeline_mode<synchronous>, transform_indices = @transform_3, window_bounds = array<i64: 1, 4>}]} {
    %c0 = arith.constant 0 : index
    %c0_0 = arith.constant 0 : index
    %0 = vector.load %arg1[%c0, %c0_0] : memref<4x64xf32, #tpu.memory_space<vmem>>, vector<4x64xf32>
    %c0_1 = arith.constant 0 : index
    %c0_2 = arith.constant 0 : index
    %1 = vector.load %arg2[%c0_1, %c0_2] : memref<4x64xf32, #tpu.memory_space<vmem>>, vector<4x64xf32>
    %c0_3 = arith.constant 0 : index
    %c0_4 = arith.constant 0 : index
    %2 = vector.load %arg3[%c0_3, %c0_4] : memref<4x64xf32, #tpu.memory_space<vmem>>, vector<4x64xf32>
    %3 = arith.subf %0, %1 : vector<4x64xf32>
    %4 = arith.mulf %3, %3 : vector<4x64xf32>
    %5 = vector.shape_cast %4 : vector<4x64xf32> to vector<1x4x64xf32>
    %cst = arith.constant dense<0.000000e+00> : vector<1xf32>
    %6 = vector.multi_reduction <add>, %5, %cst [1, 2] : vector<1x4x64xf32> to vector<1xf32>
    %7 = vector.shape_cast %6 : vector<1xf32> to vector<1x1x1xf32>
    %8 = vector.extract %7[0, 0, 0] : f32 from vector<1x1x1xf32>
    %9 = arith.subf %0, %2 : vector<4x64xf32>
    %10 = arith.mulf %9, %9 : vector<4x64xf32>
    %11 = vector.shape_cast %10 : vector<4x64xf32> to vector<1x4x64xf32>
    %cst_5 = arith.constant dense<0.000000e+00> : vector<1xf32>
    %12 = vector.multi_reduction <add>, %11, %cst_5 [1, 2] : vector<1x4x64xf32> to vector<1xf32>
    %13 = vector.shape_cast %12 : vector<1xf32> to vector<1x1x1xf32>
    %14 = vector.extract %13[0, 0, 0] : f32 from vector<1x1x1xf32>
    %cst_6 = arith.constant dense<0.000000e+00> : vector<64xf32>
    %15 = vector.multi_reduction <add>, %0, %cst_6 [0] : vector<4x64xf32> to vector<64xf32>
    %16 = vector.shape_cast %15 : vector<64xf32> to vector<1x64xf32>
    %cst_7 = arith.constant 8.000000e+01 : f32
    %17 = vector.broadcast %cst_7 : f32 to vector<1x64xf32>
    %18 = arith.subf %16, %17 : vector<1x64xf32>
    %cst_8 = arith.constant 0.000000e+00 : f32
    %19 = vector.broadcast %cst_8 : f32 to vector<1x64xf32>
    %20 = arith.maximumf %18, %19 : vector<1x64xf32>
    %21 = vector.shape_cast %20 : vector<1x64xf32> to vector<1x1x64xf32>
    %cst_9 = arith.constant dense<0.000000e+00> : vector<1xf32>
    %22 = vector.multi_reduction <add>, %21, %cst_9 [1, 2] : vector<1x1x64xf32> to vector<1xf32>
    %23 = vector.shape_cast %22 : vector<1xf32> to vector<1x1x1xf32>
    %24 = vector.extract %23[0, 0, 0] : f32 from vector<1x1x1xf32>
    %25 = vector.extract_strided_slice %0 {offsets = [2, 0], sizes = [1, 64], strides = [1, 1]} : vector<4x64xf32> to vector<1x64xf32>
    %26 = vector.extract_strided_slice %0 {offsets = [0, 0], sizes = [1, 64], strides = [1, 1]} : vector<4x64xf32> to vector<1x64xf32>
    %27 = vector.extract_strided_slice %0 {offsets = [1, 0], sizes = [1, 64], strides = [1, 1]} : vector<4x64xf32> to vector<1x64xf32>
    %28 = arith.maximumf %26, %27 : vector<1x64xf32>
    %29 = vector.extract_strided_slice %0 {offsets = [3, 0], sizes = [1, 64], strides = [1, 1]} : vector<4x64xf32> to vector<1x64xf32>
    %30 = arith.maximumf %28, %29 : vector<1x64xf32>
    %cst_10 = arith.constant 1.200000e+00 : f32
    %31 = vector.broadcast %cst_10 : f32 to vector<1x64xf32>
    %32 = arith.mulf %31, %25 : vector<1x64xf32>
    %33 = arith.subf %30, %32 : vector<1x64xf32>
    %cst_11 = arith.constant 0.000000e+00 : f32
    %34 = vector.broadcast %cst_11 : f32 to vector<1x64xf32>
    %35 = arith.maximumf %33, %34 : vector<1x64xf32>
    %36 = vector.shape_cast %35 : vector<1x64xf32> to vector<1x1x64xf32>
    %cst_12 = arith.constant dense<0.000000e+00> : vector<1xf32>
    %37 = vector.multi_reduction <add>, %36, %cst_12 [1, 2] : vector<1x1x64xf32> to vector<1xf32>
    %38 = vector.shape_cast %37 : vector<1xf32> to vector<1x1x1xf32>
    %39 = vector.extract %38[0, 0, 0] : f32 from vector<1x1x1xf32>
    %40 = tpu.iota {dimensions = array<i32: 1>} : vector<1x4xi32>
    %c0_i32 = arith.constant 0 : i32
    %41 = vector.broadcast %c0_i32 : i32 to vector<1x4xi32>
    %42 = arith.cmpi eq, %40, %41 : vector<1x4xi32>
    %cst_13 = arith.constant 0.000000e+00 : f32
    %43 = vector.broadcast %8 : f32 to vector<1x4xf32>
    %44 = vector.broadcast %cst_13 : f32 to vector<1x4xf32>
    %45 = arith.select %42, %43, %44 : vector<1x4xi1>, vector<1x4xf32>
    %c1_i32 = arith.constant 1 : i32
    %46 = vector.broadcast %c1_i32 : i32 to vector<1x4xi32>
    %47 = arith.cmpi eq, %40, %46 : vector<1x4xi32>
    %cst_14 = arith.constant 0.000000e+00 : f32
    %48 = vector.broadcast %14 : f32 to vector<1x4xf32>
    %49 = vector.broadcast %cst_14 : f32 to vector<1x4xf32>
    %50 = arith.select %47, %48, %49 : vector<1x4xi1>, vector<1x4xf32>
    %51 = arith.addf %45, %50 : vector<1x4xf32>
    %c2_i32 = arith.constant 2 : i32
    %52 = vector.broadcast %c2_i32 : i32 to vector<1x4xi32>
    %53 = arith.cmpi eq, %40, %52 : vector<1x4xi32>
    %cst_15 = arith.constant 0.000000e+00 : f32
    %54 = vector.broadcast %24 : f32 to vector<1x4xf32>
    %55 = vector.broadcast %cst_15 : f32 to vector<1x4xf32>
    %56 = arith.select %53, %54, %55 : vector<1x4xi1>, vector<1x4xf32>
    %57 = arith.addf %51, %56 : vector<1x4xf32>
    %c3_i32 = arith.constant 3 : i32
    %58 = vector.broadcast %c3_i32 : i32 to vector<1x4xi32>
    %59 = arith.cmpi eq, %40, %58 : vector<1x4xi32>
    %cst_16 = arith.constant 0.000000e+00 : f32
    %60 = vector.broadcast %39 : f32 to vector<1x4xf32>
    %61 = vector.broadcast %cst_16 : f32 to vector<1x4xf32>
    %62 = arith.select %59, %60, %61 : vector<1x4xi1>, vector<1x4xf32>
    %63 = arith.addf %57, %62 : vector<1x4xf32>
    %c0_17 = arith.constant 0 : index
    %c0_18 = arith.constant 0 : index
    %64 = vector.load %arg4[%c0_17, %c0_18] : memref<1x4xf32, #tpu.memory_space<vmem>>, vector<1x4xf32>
    tpu.vector_store %arg4[%c0_17, %c0_18], %63 {strides = array<i32>} : memref<1x4xf32, #tpu.memory_space<vmem>>, vector<1x4xf32>,
    return
  }
  func.func @transform_0(%arg0: i32) -> (i32, i32) {
    %c0_i32 = arith.constant 0 : i32
    %c0_i32_0 = arith.constant 0 : i32
    %c0_i32_1 = arith.constant 0 : i32
    return %c0_i32, %c0_i32_0 : i32, i32
  }
  func.func @transform_1(%arg0: i32) -> (i32, i32) {
    %c0_i32 = arith.constant 0 : i32
    %c0_i32_0 = arith.constant 0 : i32
    %c0_i32_1 = arith.constant 0 : i32
    return %c0_i32, %c0_i32_0 : i32, i32
  }
  func.func @transform_2(%arg0: i32) -> (i32, i32) {
    %c0_i32 = arith.constant 0 : i32
    %c0_i32_0 = arith.constant 0 : i32
    %c0_i32_1 = arith.constant 0 : i32
    return %c0_i32, %c0_i32_0 : i32, i32
  }
  func.func @transform_3(%arg0: i32) -> (i32, i32) {
    %c0_i32 = arith.constant 0 : i32
    %c0_i32_0 = arith.constant 0 : i32
    %c0_i32_1 = arith.constant 0 : i32
    return %c0_i32, %c0_i32_0 : i32, i32
  }
}

</mosaic_0001>

<llo_original>
// kernel: emd_informed_loss.2
$region0: #{emd_informed_loss.2}
  #allocation0 [shape = 'u32[]', space=smem, size = 0x4, offset = 0x4, fixed_abs, tag = 'smem constant byte address 0x4 - core index']
  #allocation1 [shape = 'u32[144,128]{1,0:T(1,128)}', space=vmem, size = 0x12000, scoped, tag = 'internal scratch']
  #allocation2 [shape = 'f32[1,128]{1,0:T(1,128)}', space=vmem, size = 0x200, scoped, tag = 'scratch operand']
  %s0 = inlined_call_operand.vmem [shape: f32[64,256], index: 0, kind: input, shape index: {}]
  %s1 = inlined_call_operand.vmem [shape: f32[64,256], index: 1, kind: input, shape index: {}]
  %s2 = inlined_call_operand.vmem [shape: f32[2,1,1], index: 2, kind: output, shape index: {}]
  %s3 = sld [smem:[#allocation0]]
  $region125: #{emd_informed_loss.2} parent=0
    _
  %s5 = ssub.s32 1, %s3
  %s6 = scalar_select 0, %s5, %s3
  $region1: #{emd_informed_loss.2} parent=0
    #allocation3 [shape = 'u8[32768]{0}', space=vmem, size = 0x8000, scoped, tag = 'input window, operand 0']
    #allocation4 [shape = 'u8[32768]{0}', space=vmem, size = 0x8000, scoped, tag = 'input window, operand 1']
    loop: start=0, step=1, limit=6
    $region2: #{emd_informed_loss.2} parent=1 // loop_pre_header
      _
    $region3: #{emd_informed_loss.2} parent=1 // loop_header
      %s8 = sphi 0, %s12
      %p9 = scmp.ge.s32.totalorder %s8, 6
      %s15 = sphi 0, %s27
      %s16 = sphi 0, %s23
      %s17 = sphi 0, %s15
      %s18 = sphi 0, %s16
      %s19 = sphi 0, %s17
      %s20 = sphi 0, %s18
      %s32 = sphi 0, %s34
      %s35 = sphi 0, %s32
      %s36 = sphi 0, %s35
      %s52 = sphi 0, %s36
      %s60 = sphi 0, %s62
      %s63 = sphi 0, %s60
      %s64 = sphi 0, %s63
      %s80 = sphi 0, %s64
      %s86 = sphi 0, %s88
      %s89 = sphi 0, %s86
      %s90 = sphi 0, %s89
      %s106 = sphi 0, %s90
    $region4: #{emd_informed_loss.2} parent=1 // loop_header_branch
      %11 = sbr.rel (%p9) target = $region8
    $region5: #{emd_informed_loss.2} parent=1 // loop_body
      %s13 = ssub.s32 %s8, 1
      %s14 = ssub.s32 %s8, 2
      %s21 = sadd.s32 1, %s16
      %p22 = scmp.ge.s32.totalorder %s21, 2
      %s23 = scalar_select %p22, 0, %s21
      %s24 = sadd.s32 1, %s15
      %s25 = scalar_select %p22, %s24, %s15
      %p26 = scmp.ge.s32.totalorder %s25, 2
      %s27 = scalar_select %p26, 0, %s25
      %s28 = ssub.s32 %s15, %s27
      %s29 = ssub.s32 %s16, %s23
      %s30 = sor.u32 %s28, %s29
      %p31 = scmp.eq.s32.totalorder %s30, 0
      %s33 = sadd.s32 %s32, 1
      %s34 = scalar_select %p31, %s32, %s33
      %p37 = pneg %p31
      %p38 = scmp.eq.s32.totalorder %s8, 3
      %p39 = por %p37, %p38
      %p40 = scmp.ne.s32.totalorder %s32, %s35
      %p41 = scmp.eq.s32.totalorder %s8, 0
      %p42 = por %p40, %p41
      %p43 = scmp.ne.s32.totalorder %s32, %s35
      %p44 = scmp.eq.s32.totalorder %s13, 3
      %p45 = por %p43, %p44
      %p46 = scmp.ne.s32.totalorder %s35, %s36
      %p47 = scmp.eq.s32.totalorder %s13, 0
      %p48 = por %p46, %p47
      %p49 = scmp.ne.s32.totalorder %s35, %s36
      %p50 = scmp.eq.s32.totalorder %s14, 3
      %p51 = por %p49, %p50
      %p53 = scmp.ne.s32.totalorder %s36, %s52
      %p54 = scmp.eq.s32.totalorder %s14, 0
      %p55 = por %p53, %p54
      %s56 = ssub.s32 %s15, %s27
      %s57 = ssub.s32 %s16, %s23
      %s58 = sor.u32 %s56, %s57
      %p59 = scmp.eq.s32.totalorder %s58, 0
      %s61 = sadd.s32 %s60, 1
      %s62 = scalar_select %p59, %s60, %s61
      %p65 = pneg %p59
      %p66 = scmp.eq.s32.totalorder %s8, 3
      %p67 = por %p65, %p66
      %p68 = scmp.ne.s32.totalorder %s60, %s63
      %p69 = scmp.eq.s32.totalorder %s8, 0
      %p70 = por %p68, %p69
      %p71 = scmp.ne.s32.totalorder %s60, %s63
      %p72 = scmp.eq.s32.totalorder %s13, 3
      %p73 = por %p71, %p72
      %p74 = scmp.ne.s32.totalorder %s63, %s64
      %p75 = scmp.eq.s32.totalorder %s13, 0
      %p76 = por %p74, %p75
      %p77 = scmp.ne.s32.totalorder %s63, %s64
      %p78 = scmp.eq.s32.totalorder %s14, 3
      %p79 = por %p77, %p78
      %p81 = scmp.ne.s32.totalorder %s64, %s80
      %p82 = scmp.eq.s32.totalorder %s14, 0
      %p83 = por %p81, %p82
      %s84 = ssub.s32 %s15, %s27
      %p85 = scmp.eq.s32.totalorder %s84, 0
      %s87 = sadd.s32 %s86, 1
      %s88 = scalar_select %p85, %s86, %s87
      %p91 = pneg %p85
      %p92 = scmp.eq.s32.totalorder %s8, 3
      %p93 = por %p91, %p92
      %p94 = scmp.ne.s32.totalorder %s86, %s89
      %p95 = scmp.eq.s32.totalorder %s8, 0
      %p96 = por %p94, %p95
      %p97 = scmp.ne.s32.totalorder %s86, %s89
      %p98 = scmp.eq.s32.totalorder %s13, 3
      %p99 = por %p97, %p98
      %p100 = scmp.ne.s32.totalorder %s89, %s90
      %p101 = scmp.eq.s32.totalorder %s13, 0
      %p102 = por %p100, %p101
      %p103 = scmp.ne.s32.totalorder %s89, %s90
      %p104 = scmp.eq.s32.totalorder %s14, 3
      %p105 = por %p103, %p104
      %p107 = scmp.ne.s32.totalorder %s90, %s106
      %p108 = scmp.eq.s32.totalorder %s14, 0
      %p109 = por %p107, %p108
      %p110 = scmp.le.s32.totalorder 1, %s8
      %p111 = scmp.lt.s32.totalorder %s8, 5
      %p112 = pnand %p110, %p111
      %p113 = pneg %p112
      // Predicated region
      $region9: #{emd_informed_loss.2} parent=5 // pred_check
        _
      $region10: #{emd_informed_loss.2} parent=5 // pred_check_branch
        %115 = sbr.rel (%p112) target = $region12
      $region11: #{emd_informed_loss.2} parent=5 // pred_region
        %s116 = ssub.s32 %s8, 1
      $region12: #{emd_informed_loss.2} parent=5 // pred_fallthru
        _
      %p117 = scmp.lt.s32.totalorder %s8, 4
      // Predicated region
      $region13: #{emd_informed_loss.2} parent=5 // pred_check
        %p118 = pneg %p117
      $region14: #{emd_informed_loss.2} parent=5 // pred_check_branch
        %120 = sbr.rel (%p118) target = $region16
      $region15: #{emd_informed_loss.2} parent=5 // pred_region
        // Predicated region
        $region17: #{emd_informed_loss.2} parent=15 // pred_check
          %p121 = pneg %p42
        $region18: #{emd_informed_loss.2} parent=15 // pred_check_branch
          %123 = sbr.rel (%p121) target = $region20
        $region19: #{emd_informed_loss.2} parent=15 // pred_region
          %s124 = sand.u32 %s32, 1
          %s125 = sand.u32 %s32, 1
          %s126 = smul.addr %s125, 32
          %s127 = scalar_lea.vmem [#allocation3], %s126
          %s128 = smul.u32 4, %s15
          %s129 = smul.addr %s128, 2
          %s130 = sadd.s32 %s16, %s129
          %s131 = smul.addr %s130, 8
          %s132 = scalar_lea.vmem %s0, %s131
          // Predicated region
          $region21: #{emd_informed_loss.2} parent=19 // pred_check
            _
          $region22: #{emd_informed_loss.2} parent=19 // pred_check_branch
            %134 = sbr.rel (0) target = $region24
          $region23: #{emd_informed_loss.2} parent=19 // pred_region
            // Predicated region
            $region25: #{emd_informed_loss.2} parent=23 // pred_check
              _
            $region26: #{emd_informed_loss.2} parent=23 // pred_check_branch
              %136 = sbr.rel (0) target = $region28
            $region27: #{emd_informed_loss.2} parent=23 // pred_region
              // Predicated region
              $region40: #{emd_informed_loss.2} parent=27 // pred_check
                _
              $region41: #{emd_informed_loss.2} parent=27 // pred_check_branch
                %157 = sbr.rel (0) target = $region43
              $region42: #{emd_informed_loss.2} parent=27 // pred_region
                loop: start=0, step=1, limit=1
                $region44: #{emd_informed_loss.2} parent=42 // loop_pre_header
                  _
                $region45: #{emd_informed_loss.2} parent=42 // loop_header
                  %s159 = sphi 0, %s163
                  %p160 = scmp.ge.s32.totalorder %s159, 1
                  %s164 = sphi %s132, %s132
                  %s165 = sphi %s127, %s127
                $region46: #{emd_informed_loss.2} parent=42 // loop_header_branch
                  %162 = sbr.rel (%p160) target = $region50
                $region47: #{emd_informed_loss.2} parent=42 // loop_body
                  %v166 = vld [vmem:[%s164] sm:$0xff]
                  %167 = vst [vmem:[%s165] sm:$0xff] %v166
                  %v168 = vld [vmem:[%s164 + $0x10] sm:$0xff]
                  %169 = vst [vmem:[%s165 + $0x8] sm:$0xff] %v168
                  %v170 = vld [vmem:[%s164 + $0x20] sm:$0xff]
                  %171 = vst [vmem:[%s165 + $0x10] sm:$0xff] %v170
                  %v172 = vld [vmem:[%s164 + $0x30] sm:$0xff]
                  %173 = vst [vmem:[%s165 + $0x18] sm:$0xff] %v172
                $region48: #{emd_informed_loss.2} parent=42 // loop_footer
                  %s163 = sadd.s32 1, %s159
                $region49: #{emd_informed_loss.2} parent=42 // loop_footer_branch
                  %158 = sbr.rel target = $region45
                $region50: #{emd_informed_loss.2} parent=42 // loop_exit
                  _
              $region43: #{emd_informed_loss.2} parent=27 // pred_fallthru
                _
              // Predicated region
              $region51: #{emd_informed_loss.2} parent=27 // pred_check
                _
              $region52: #{emd_informed_loss.2} parent=27 // pred_check_branch
                %175 = sbr.rel target = $region54
              $region53: #{emd_informed_loss.2} parent=27 // pred_region
                _
              $region54: #{emd_informed_loss.2} parent=27 // pred_fallthru
                _
            $region28: #{emd_informed_loss.2} parent=23 // pred_fallthru
              _
            // Predicated region
            $region29: #{emd_informed_loss.2} parent=23 // pred_check
              _
            $region30: #{emd_informed_loss.2} parent=23 // pred_check_branch
              %138 = sbr.rel target = $region32
            $region31: #{emd_informed_loss.2} parent=23 // pred_region
              loop: start=0, step=1, limit=1
              $region33: #{emd_informed_loss.2} parent=31 // loop_pre_header
                _
              $region34: #{emd_informed_loss.2} parent=31 // loop_header
                %s141 = sphi 0, %s145
                %p142 = scmp.ge.s32.totalorder %s141, 1
                %s146 = sphi %s132, %s132
                %s147 = sphi %s127, %s127
              $region35: #{emd_informed_loss.2} parent=31 // loop_header_branch
                %144 = sbr.rel (%p142) target = $region39
              $region36: #{emd_informed_loss.2} parent=31 // loop_body
                %v148 = vld [vmem:[%s146] sm:$0xff]
                %149 = vst [vmem:[%s147] sm:$0xff] %v148
                %v150 = vld [vmem:[%s146 + $0x10] sm:$0xff]
                %151 = vst [vmem:[%s147 + $0x8] sm:$0xff] %v150
                %v152 = vld [vmem:[%s146 + $0x20] sm:$0xff]
                %153 = vst [vmem:[%s147 + $0x10] sm:$0xff] %v152
                %v154 = vld [vmem:[%s146 + $0x30] sm:$0xff]
                %155 = vst [vmem:[%s147 + $0x18] sm:$0xff] %v154
              $region37: #{emd_informed_loss.2} parent=31 // loop_footer
                %s145 = sadd.s32 1, %s141
              $region38: #{emd_informed_loss.2} parent=31 // loop_footer_branch
                %140 = sbr.rel target = $region34
              $region39: #{emd_informed_loss.2} parent=31 // loop_exit
                _
            $region32: #{emd_informed_loss.2} parent=23 // pred_fallthru
              _
          $region24: #{emd_informed_loss.2} parent=19 // pred_fallthru
            _
          %176 = vnop
        $region20: #{emd_informed_loss.2} parent=15 // pred_fallthru
          _
        // Predicated region
        $region55: #{emd_informed_loss.2} parent=15 // pred_check
          %p177 = pneg %p70
        $region56: #{emd_informed_loss.2} parent=15 // pred_check_branch
          %179 = sbr.rel (%p177) target = $region58
        $region57: #{emd_informed_loss.2} parent=15 // pred_region
          %s180 = sand.u32 %s60, 1
          %s181 = sand.u32 %s60, 1
          %s182 = smul.addr %s181, 32
          %s183 = scalar_lea.vmem [#allocation4], %s182
          %s184 = smul.u32 4, %s15
          %s185 = smul.addr %s184, 2
          %s186 = sadd.s32 %s16, %s185
          %s187 = smul.addr %s186, 8
          %s188 = scalar_lea.vmem %s1, %s187
          // Predicated region
          $region59: #{emd_informed_loss.2} parent=57 // pred_check
            _
          $region60: #{emd_informed_loss.2} parent=57 // pred_check_branch
            %190 = sbr.rel (0) target = $region62
          $region61: #{emd_informed_loss.2} parent=57 // pred_region
            // Predicated region
            $region63: #{emd_informed_loss.2} parent=61 // pred_check
              _
            $region64: #{emd_informed_loss.2} parent=61 // pred_check_branch
              %192 = sbr.rel (0) target = $region66
            $region65: #{emd_informed_loss.2} parent=61 // pred_region
              // Predicated region
              $region78: #{emd_informed_loss.2} parent=65 // pred_check
                _
              $region79: #{emd_informed_loss.2} parent=65 // pred_check_branch
                %213 = sbr.rel (0) target = $region81
              $region80: #{emd_informed_loss.2} parent=65 // pred_region
                loop: start=0, step=1, limit=1
                $region82: #{emd_informed_loss.2} parent=80 // loop_pre_header
                  _
                $region83: #{emd_informed_loss.2} parent=80 // loop_header
                  %s215 = sphi 0, %s219
                  %p216 = scmp.ge.s32.totalorder %s215, 1
                  %s220 = sphi %s188, %s188
                  %s221 = sphi %s183, %s183
                $region84: #{emd_informed_loss.2} parent=80 // loop_header_branch
                  %218 = sbr.rel (%p216) target = $region88
                $region85: #{emd_informed_loss.2} parent=80 // loop_body
                  %v222 = vld [vmem:[%s220] sm:$0xff]
                  %223 = vst [vmem:[%s221] sm:$0xff] %v222
                  %v224 = vld [vmem:[%s220 + $0x10] sm:$0xff]
                  %225 = vst [vmem:[%s221 + $0x8] sm:$0xff] %v224
                  %v226 = vld [vmem:[%s220 + $0x20] sm:$0xff]
                  %227 = vst [vmem:[%s221 + $0x10] sm:$0xff] %v226
                  %v228 = vld [vmem:[%s220 + $0x30] sm:$0xff]
                  %229 = vst [vmem:[%s221 + $0x18] sm:$0xff] %v228
                $region86: #{emd_informed_loss.2} parent=80 // loop_footer
                  %s219 = sadd.s32 1, %s215
                $region87: #{emd_informed_loss.2} parent=80 // loop_footer_branch
                  %214 = sbr.rel target = $region83
                $region88: #{emd_informed_loss.2} parent=80 // loop_exit
                  _
              $region81: #{emd_informed_loss.2} parent=65 // pred_fallthru
                _
              // Predicated region
              $region89: #{emd_informed_loss.2} parent=65 // pred_check
                _
              $region90: #{emd_informed_loss.2} parent=65 // pred_check_branch
                %231 = sbr.rel target = $region92
              $region91: #{emd_informed_loss.2} parent=65 // pred_region
                _
              $region92: #{emd_informed_loss.2} parent=65 // pred_fallthru
                _
            $region66: #{emd_informed_loss.2} parent=61 // pred_fallthru
              _
            // Predicated region
            $region67: #{emd_informed_loss.2} parent=61 // pred_check
              _
            $region68: #{emd_informed_loss.2} parent=61 // pred_check_branch
              %194 = sbr.rel target = $region70
            $region69: #{emd_informed_loss.2} parent=61 // pred_region
              loop: start=0, step=1, limit=1
              $region71: #{emd_informed_loss.2} parent=69 // loop_pre_header
                _
              $region72: #{emd_informed_loss.2} parent=69 // loop_header
                %s197 = sphi 0, %s201
                %p198 = scmp.ge.s32.totalorder %s197, 1
                %s202 = sphi %s188, %s188
                %s203 = sphi %s183, %s183
              $region73: #{emd_informed_loss.2} parent=69 // loop_header_branch
                %200 = sbr.rel (%p198) target = $region77
              $region74: #{emd_informed_loss.2} parent=69 // loop_body
                %v204 = vld [vmem:[%s202] sm:$0xff]
                %205 = vst [vmem:[%s203] sm:$0xff] %v204
                %v206 = vld [vmem:[%s202 + $0x10] sm:$0xff]
                %207 = vst [vmem:[%s203 + $0x8] sm:$0xff] %v206
                %v208 = vld [vmem:[%s202 + $0x20] sm:$0xff]
                %209 = vst [vmem:[%s203 + $0x10] sm:$0xff] %v208
                %v210 = vld [vmem:[%s202 + $0x30] sm:$0xff]
                %211 = vst [vmem:[%s203 + $0x18] sm:$0xff] %v210
              $region75: #{emd_informed_loss.2} parent=69 // loop_footer
                %s201 = sadd.s32 1, %s197
              $region76: #{emd_informed_loss.2} parent=69 // loop_footer_branch
                %196 = sbr.rel target = $region72
              $region77: #{emd_informed_loss.2} parent=69 // loop_exit
                _
            $region70: #{emd_informed_loss.2} parent=61 // pred_fallthru
              _
          $region62: #{emd_informed_loss.2} parent=57 // pred_fallthru
            _
          %232 = vnop
        $region58: #{emd_informed_loss.2} parent=15 // pred_fallthru
          _
      $region16: #{emd_informed_loss.2} parent=5 // pred_fallthru
        _
      %p233 = scmp.le.s32.totalorder 1, %s8
      %p234 = scmp.lt.s32.totalorder %s8, 5
      %p235 = pnand %p233, %p234
      %p236 = pneg %p235
      // Predicated region
      $region93: #{emd_informed_loss.2} parent=5 // pred_check
        _
      $region94: #{emd_informed_loss.2} parent=5 // pred_check_branch
        %238 = sbr.rel (%p235) target = $region96
      $region95: #{emd_informed_loss.2} parent=5 // pred_region
        %s239 = ssub.s32 %s8, 1
        %s240 = sand.u32 %s35, 1
        %s241 = sand.u32 %s35, 1
        %s242 = smul.addr %s241, 32
        %s243 = scalar_lea.vmem [#allocation3], %s242
        // Predicated region
        $region97: #{emd_informed_loss.2} parent=95 // pred_check
          %p244 = pneg %p48
        $region98: #{emd_informed_loss.2} parent=95 // pred_check_branch
          %246 = sbr.rel (%p244) target = $region100
        $region99: #{emd_informed_loss.2} parent=95 // pred_region
          _
        $region100: #{emd_informed_loss.2} parent=95 // pred_fallthru
          _
        %s247 = sand.u32 %s63, 1
        %s248 = sand.u32 %s63, 1
        %s249 = smul.addr %s248, 32
        %s250 = scalar_lea.vmem [#allocation4], %s249
        // Predicated region
        $region101: #{emd_informed_loss.2} parent=95 // pred_check
          %p251 = pneg %p76
        $region102: #{emd_informed_loss.2} parent=95 // pred_check_branch
          %253 = sbr.rel (%p251) target = $region104
        $region103: #{emd_informed_loss.2} parent=95 // pred_region
          _
        $region104: #{emd_informed_loss.2} parent=95 // pred_fallthru
          _
        %s254 = sand.u32 %s35, 1
        %s255 = sand.u32 %s35, 1
        %s256 = smul.addr %s255, 32
        %s257 = scalar_lea.vmem [#allocation3], %s256
        %p258 = pneg %p48
        %p259 = pneg %p45
        %s260 = sand.u32 %s63, 1
        %s261 = sand.u32 %s63, 1
        %s262 = smul.addr %s261, 32
        %s263 = scalar_lea.vmem [#allocation4], %s262
        %p264 = pneg %p76
        %p265 = pneg %p73
        %p266 = pneg %p102
        %p267 = pneg %p99
        %p268 = scmp.lt.s32.totalorder %s17, 1
        %s269 = scalar_select %p268, %s17, 1
        %s270 = scalar_lea.vmem %s2, %s269
        %s271 = smul.u32 4, %s17
        %s272 = smul.u32 4, %s17
        %p273 = scmp.lt.s32.totalorder %s17, 1
        %s274 = scalar_select %p273, %s17, 1
        %s275 = scalar_lea.vmem %s2, %s274
        %p276 = scmp.eq.s32.totalorder %s18, 0
        // Predicated region
        $region105: #{emd_informed_loss.2} parent=95 // pred_check
          %p277 = pneg %p276
        $region106: #{emd_informed_loss.2} parent=95 // pred_check_branch
          %279 = sbr.rel (%p277) target = $region108
        $region107: #{emd_informed_loss.2} parent=95 // pred_region
          %280 = vst [vmem:[#allocation2] sm:$0x1] 0.0
        $region108: #{emd_informed_loss.2} parent=95 // pred_fallthru
          _
        %v281 = vld [vmem:[%s243] sm:$0xff]
        %v282 = vld [vmem:[%s243 + $0x8] sm:$0xff]
        %v283 = vld [vmem:[%s243 + $0x10] sm:$0xff]
        %v284 = vld [vmem:[%s243 + $0x18] sm:$0xff]
        %v285 = vld [vmem:[%s250] sm:$0xff]
        %v286 = vld [vmem:[%s250 + $0x8] sm:$0xff]
        %v287 = vld [vmem:[%s250 + $0x10] sm:$0xff]
        %v288 = vld [vmem:[%s250 + $0x18] sm:$0xff]
        %v289 = vsub.f32 %v281, %v285
        %v290 = vsub.f32 %v282, %v286
        %v291 = vsub.f32 %v283, %v287
        %v292 = vsub.f32 %v284, %v288
        %v293 = vld [vmem:[#allocation2] sm:$0x1]
        %v294 = vmul.f32 %v289, %v289
        %v295 = vmul.f32 %v290, %v290
        %v296 = vmul.f32 %v291, %v291
        %v297 = vmul.f32 %v292, %v292
        %v298 = vadd.f32 %v294, %v295
        %v299 = vadd.f32 %v298, %v296
        %v300 = vadd.f32 %v299, %v297
        %v301 = vrot.slane %v300, 4
        %v302 = vadd.f32 %v300, %v301
        %v303 = vrot.slane %v302, 2
        %v304 = vadd.f32 %v302, %v303
        %v305 = vrot.slane %v304, 1
        %v306 = vadd.f32 %v304, %v305
        %v307 = vadd.f32 %v293, %v306
        %308 = vst [vmem:[#allocation2] sm:$0x1] %v307
        %p309 = scmp.eq.s32.totalorder %s18, 1
        // Predicated region
        $region109: #{emd_informed_loss.2} parent=95 // pred_check
          %p310 = pneg %p309
        $region110: #{emd_informed_loss.2} parent=95 // pred_check_branch
          %312 = sbr.rel (%p310) target = $region112
        $region111: #{emd_informed_loss.2} parent=95 // pred_region
          %v313 = vld [vmem:[#allocation2] sm:$0x1]
          %vm314 = vcmask 1040384
          %v315 = vsel %vm314, %v313, 0.0
          %316 = vadd.xlane.f32.xlu0 %v315
          %v317 = vpop.xlane.xlu0 %316
          %v318 = vrot.slane %v317, 4
          %v319 = vadd.f32 %v317, %v318
          %v320 = vrot.slane %v319, 2
          %v321 = vadd.f32 %v319, %v320
          %v322 = vrot.slane %v321, 1
          %v323 = vadd.f32 %v321, %v322
          %s324 = vtos %v323
          %v325 = vstv %s324
          %v326 = vadd.f32 %v325, 0.0
          %vm327 = vcmask 0
          %328 = vst.msk [vmem:[%s275] sm:$0x1] %vm327, %v326
        $region112: #{emd_informed_loss.2} parent=95 // pred_fallthru
          _
        %p329 = scmp.lt.s32.totalorder %s17, 1
        %s330 = scalar_select %p329, %s17, 1
        %s331 = scalar_lea.vmem %s2, %s330
        // Predicated region
        $region113: #{emd_informed_loss.2} parent=95 // pred_check
          %p332 = pneg %p99
        $region114: #{emd_informed_loss.2} parent=95 // pred_check_branch
          %334 = sbr.rel (%p332) target = $region116
        $region115: #{emd_informed_loss.2} parent=95 // pred_region
          _
        $region116: #{emd_informed_loss.2} parent=95 // pred_fallthru
          _
      $region96: #{emd_informed_loss.2} parent=5 // pred_fallthru
        _
      %p335 = scmp.le.s32.totalorder 2, %s8
      // Predicated region
      $region117: #{emd_informed_loss.2} parent=5 // pred_check
        %p336 = pneg %p335
      $region118: #{emd_informed_loss.2} parent=5 // pred_check_branch
        %338 = sbr.rel (%p336) target = $region120
      $region119: #{emd_informed_loss.2} parent=5 // pred_region
        %s339 = ssub.s32 %s8, 2
        // Predicated region
        $region121: #{emd_informed_loss.2} parent=119 // pred_check
          %p340 = pneg %p105
        $region122: #{emd_informed_loss.2} parent=119 // pred_check_branch
          %342 = sbr.rel (%p340) target = $region124
        $region123: #{emd_informed_loss.2} parent=119 // pred_region
          %p343 = scmp.lt.s32.totalorder %s19, 1
          %s344 = scalar_select %p343, %s19, 1
          %s345 = scalar_lea.vmem %s2, %s344
        $region124: #{emd_informed_loss.2} parent=119 // pred_fallthru
          _
      $region120: #{emd_informed_loss.2} parent=5 // pred_fallthru
        _
    $region6: #{emd_informed_loss.2} parent=1 // loop_footer
      %s12 = sadd.s32 1, %s8
    $region7: #{emd_informed_loss.2} parent=1 // loop_footer_branch
      %7 = sbr.rel target = $region3
    $region8: #{emd_informed_loss.2} parent=1 // loop_exit
      _

// kernel: emd_informed_loss.3
$region0: #{emd_informed_loss.3}
  #allocation0 [shape = 'u32[]', space=smem, size = 0x4, offset = 0x4, fixed_abs, tag = 'smem constant byte address 0x4 - core index']
  #allocation1 [shape = 'u32[144,128]{1,0:T(1,128)}', space=vmem, size = 0x12000, scoped, tag = 'internal scratch']
  %s0 = inlined_call_operand.vmem [shape: f32[4,64], index: 0, kind: input, shape index: {}]
  %s1 = inlined_call_operand.vmem [shape: f32[4,64], index: 1, kind: input, shape index: {}]
  %s2 = inlined_call_operand.vmem [shape: f32[4,64], index: 2, kind: input, shape index: {}]
  %s3 = inlined_call_operand.vmem [shape: f32[1,4], index: 3, kind: output, shape index: {}]
  %s4 = sld [smem:[#allocation0]]
  $region22: #{emd_informed_loss.3} parent=0
    _
  %s6 = ssub.s32 1, %s4
  %s7 = scalar_select 0, %s6, %s4
  // Predicated region
  $region2: #{emd_informed_loss.3} parent=0 // pred_check
    _
  $region3: #{emd_informed_loss.3} parent=0 // pred_check_branch
    %9 = sbr.rel (0) target = $region5
  $region4: #{emd_informed_loss.3} parent=0 // pred_region
    _
  $region5: #{emd_informed_loss.3} parent=0 // pred_fallthru
    _
  // Predicated region
  $region6: #{emd_informed_loss.3} parent=0 // pred_check
    _
  $region7: #{emd_informed_loss.3} parent=0 // pred_check_branch
    %11 = sbr.rel (0) target = $region9
  $region8: #{emd_informed_loss.3} parent=0 // pred_region
    _
  $region9: #{emd_informed_loss.3} parent=0 // pred_fallthru
    _
  // Predicated region
  $region10: #{emd_informed_loss.3} parent=0 // pred_check
    _
  $region11: #{emd_informed_loss.3} parent=0 // pred_check_branch
    %13 = sbr.rel (0) target = $region13
  $region12: #{emd_informed_loss.3} parent=0 // pred_region
    _
  $region13: #{emd_informed_loss.3} parent=0 // pred_fallthru
    _
  %v14 = vld [vmem:[%s0] sm:$0xf]
  %v15 = vld [vmem:[%s1] sm:$0xf]
  %v16 = vld [vmem:[%s2] sm:$0xf]
  %v17 = vsub.f32 %v14, %v15
  %v18 = vmul.f32 %v17, %v17
  %vm19 = vcmask 519168
  %v20 = vsel %vm19, %v18, 0.0
  %21 = vadd.xlane.f32.xlu0 %v20
  %v22 = vpop.xlane.xlu0 %21
  %v23 = vrot.slane %v22, 4
  %v24 = vadd.f32 %v22, %v23
  %v25 = vrot.slane %v24, 2
  %v26 = vadd.f32 %v24, %v25
  %v27 = vrot.slane %v26, 1
  %v28 = vadd.f32 %v26, %v27
  %s29 = vtos %v28
  %v30 = vsub.f32 %v14, %v16
  %v31 = vmul.f32 %v30, %v30
  %v32 = vsel %vm19, %v31, 0.0
  %33 = vadd.xlane.f32.xlu0 %v32
  %v34 = vpop.xlane.xlu0 %33
  %v35 = vrot.slane %v34, 4
  %v36 = vadd.f32 %v34, %v35
  %v37 = vrot.slane %v36, 2
  %v38 = vadd.f32 %v36, %v37
  %v39 = vrot.slane %v38, 1
  %v40 = vadd.f32 %v38, %v39
  %s41 = vtos %v40
  %v42 = vsel %vm19, %v14, 0.0
  %v43 = vrot.slane %v42, 4
  %v44 = vadd.f32 %v42, %v43
  %v45 = vrot.slane %v44, 2
  %v46 = vadd.f32 %v44, %v45
  %v47 = vrot.slane %v46, 1
  %v48 = vadd.f32 %v46, %v47
  %v49 = vsub.f32 %v48, 80.0
  %v50 = vmax.f32 %v49, 0.0
  %vm51 = vcmask 516096
  %v52 = vsel %vm51, %v50, 0.0
  %53 = vadd.xlane.f32.xlu0 %v52
  %v54 = vpop.xlane.xlu0 %53
  %v55 = vrot.slane %v54, 4
  %v56 = vadd.f32 %v54, %v55
  %v57 = vrot.slane %v56, 2
  %v58 = vadd.f32 %v56, %v57
  %v59 = vrot.slane %v58, 1
  %v60 = vadd.f32 %v58, %v59
  %s61 = vtos %v60
  %v63 = vrot.slane %v14, 1
  %v65 = vmax.f32 %v14, %v63
  %v66 = vrot.slane %v14, 3
  %v68 = vmax.f32 %v65, %v66
  %v69 = vmul.f32 %v14, 1.2
  %v71 = vrot.slane %v69, 2
  %v73 = vsub.f32 %v68, %v71
  %v74 = vmax.f32 %v73, 0.0
  %v75 = vsel %vm51, %v74, 0.0
  %76 = vadd.xlane.f32.xlu0 %v75
  %v77 = vpop.xlane.xlu0 %76
  %v78 = vrot.slane %v77, 4
  %v79 = vadd.f32 %v77, %v78
  %v80 = vrot.slane %v79, 2
  %v81 = vadd.f32 %v79, %v80
  %v82 = vrot.slane %v81, 1
  %v83 = vadd.f32 %v81, %v82
  %s84 = vtos %v83
  %v85 = vlaneseq
  %v86 = vand.u32 %v85, 127
  %vm87 = vcmp.eq.s32.totalorder %v86, 0
  %v88 = vstv %s29
  %v89 = vsel %vm87, %v88, 0.0
  %vm90 = vcmp.eq.s32.totalorder %v86, 1
  %v91 = vstv %s41
  %v92 = vsel %vm90, %v91, 0.0
  %v93 = vadd.f32 %v89, %v92
  %vm94 = vcmp.eq.s32.totalorder %v86, 2
  %v95 = vstv %s61
  %v96 = vsel %vm94, %v95, 0.0
  %v97 = vadd.f32 %v93, %v96
  %vm98 = vcmp.eq.s32.totalorder %v86, 3
  %v99 = vstv %s84
  %v100 = vsel %vm98, %v99, 0.0
  %v101 = vadd.f32 %v97, %v100
  %vm102 = vcmask 24576
  %103 = vst.msk [vmem:[%s3] sm:$0x1] %vm102, %v101
  // Predicated region
  $region14: #{emd_informed_loss.3} parent=0 // pred_check
    _
  $region15: #{emd_informed_loss.3} parent=0 // pred_check_branch
    %105 = sbr.rel (0) target = $region17
  $region16: #{emd_informed_loss.3} parent=0 // pred_region
    _
  $region17: #{emd_informed_loss.3} parent=0 // pred_fallthru
    _
  // Predicated region
  $region18: #{emd_informed_loss.3} parent=0 // pred_check
    _
  $region19: #{emd_informed_loss.3} parent=0 // pred_check_branch
    %107 = sbr.rel (0) target = $region21
  $region20: #{emd_informed_loss.3} parent=0 // pred_region
    _
  $region21: #{emd_informed_loss.3} parent=0 // pred_fallthru
    _

</llo_original>
